<compile_context>
chip_gen: v7x
topology: tpu7x:2x2x1
jax: 0.10.0
libtpu: 0.0.40
codegen_flags: <defaults>
</compile_context>

<pallas_src>
import functools
import math

import jax
import jax.numpy as jnp
from jax.experimental import pallas as pl
from jax.experimental.pallas import tpu as pltpu


def _round_up(x, m):
    return ((x + m - 1) // m) * m


@functools.lru_cache(maxsize=1)
def _vmem_budget_bytes():
    """Scoped-VMEM budget: physical capacity minus headroom for Mosaic scratch.

    v5e/v6e: 128 MiB physical -> ~108 MiB budget.
    v7x:      64 MiB physical ->  ~48 MiB budget.
    Falls back to the conservative 64-MiB-physical assumption if the query fails.
    """
    cap = 64 * 1024 * 1024
    try:
        info_cap = int(pltpu.get_tpu_info().vmem_capacity_bytes)
        if info_cap > 0:
            cap = info_cap
    except Exception:
        pass
    return int(min(cap - 16 * 1024 * 1024, int(0.85 * cap)))


def _sublane_align(dtype):
    """Sub-32-bit dtypes pack along sublanes: bf16 -> 16 rows, 8-bit -> 32 rows."""
    itemsize = jnp.dtype(dtype).itemsize
    if itemsize >= 4:
        return 8
    if itemsize == 2:
        return 16
    return 32


def _largest_tile(dim, candidates):
    for c in candidates:
        if dim % c == 0:
            return c
    return candidates[-1]


# ----------------------------- kernels ------------------------------------ #

def _linear_resident_kernel(x_ref, w_ref, b_ref, o_ref, *, compute_dtype):
    # x_ref: (TM, Kp), w_ref: (Kp, Np) fully VMEM-resident, b_ref: (1, Np) f32,
    # o_ref: (TM, Np). Single grid axis over M: x and W each read from HBM once.
    x = x_ref[...]
    if compute_dtype is not None:
        x = x.astype(compute_dtype)
    acc = jnp.dot(x, w_ref[...], preferred_element_type=jnp.float32)
    o_ref[...] = (acc + b_ref[...]).astype(o_ref.dtype)


def _linear_tiled_kernel(x_ref, w_ref, b_ref, o_ref, acc_ref, *, compute_dtype):
    # x_ref: (TM, TK), w_ref: (TK, TN), b_ref: (1, TN) f32, o_ref: (TM, TN)
    # acc_ref: (TM, TN) f32 scratch, resident across the K grid axis.
    k = pl.program_id(2)

    @pl.when(k == 0)
    def _():
        # Fold the bias into the accumulator init: drops the epilogue add.
        acc_ref[...] = jnp.broadcast_to(b_ref[...], acc_ref.shape)

    x = x_ref[...]
    if compute_dtype is not None:
        x = x.astype(compute_dtype)
    acc_ref[...] += jnp.dot(x, w_ref[...], preferred_element_type=jnp.float32)

    @pl.when(k == pl.num_programs(2) - 1)
    def _():
        o_ref[...] = acc_ref[...].astype(o_ref.dtype)


# ----------------------------- wrapper ------------------------------------ #

def prepare_linear_norm_params(w_t, b, compute_dtype=jnp.bfloat16):
    """One-time (init-time) padding + cast of the weights, hoisted out of the forward.

    w_t: (in_dim, out_dim) -- transpose of the PyTorch nn.Linear weight
    b:   (out_dim,)
    K/N are padded to MXU-friendly multiples (256 for dims > 128, else 128); W is
    stored in compute_dtype (bf16 by default). Bias stays float32 so the add is exact.
    """
    in_dim, out_dim = w_t.shape
    k_pad = _round_up(in_dim, 256 if in_dim > 128 else 128)
    n_pad = _round_up(out_dim, 256 if out_dim > 128 else 128)
    w = w_t if compute_dtype is None else w_t.astype(compute_dtype)
    w_p = jnp.pad(w, ((0, k_pad - in_dim), (0, n_pad - out_dim)))
    b_p = jnp.pad(b.astype(jnp.float32), (0, n_pad - out_dim)).reshape(1, n_pad)
    return w_p, b_p


@functools.partial(
    jax.jit,
    static_argnames=("out_dim", "compute_dtype", "allow_xla_fallback", "force_tiled"),
)
def linear_norm_forward(x, w_p, b_p, *, out_dim, compute_dtype=jnp.bfloat16,
                        allow_xla_fallback=True, force_tiled=False):
    """y = x @ W^T + b with pre-prepared (padded/cast) weights.

    x:   (..., in_dim)
    w_p: (k_pad, n_pad) prepared weight (see prepare_linear_norm_params)
    b_p: (1, n_pad) float32 prepared bias
    compute_dtype: operand dtype for the MXU (bf16 default); accumulation is always f32
                   and the output keeps x.dtype. x is cast in-kernel (no extra HBM pass).
    """
    lead_shape = x.shape[:-1]
    in_dim = x.shape[-1]
    m = math.prod(lead_shape) if lead_shape else 1
    k_pad, n_pad = w_p.shape
    out_dtype = x.dtype

    x2 = x.reshape(m, in_dim)

    # Small-problem bailout: pallas_call fixed overhead dominates tiny matmuls.
    if (allow_xla_fallback and not force_tiled
            and (m < 128 or m * k_pad * n_pad < 256 * 256 * 256)):
        xd = x2 if compute_dtype is None else x2.astype(compute_dtype)
        y = jnp.dot(xd, w_p[:in_dim, :out_dim], preferred_element_type=jnp.float32)
        y = (y + b_p[0, :out_dim]).astype(out_dtype)
        return y.reshape(*lead_shape, out_dim)

    sub = _sublane_align(compute_dtype if compute_dtype is not None else x.dtype)
    m_al = _round_up(m, sub)

    x_bytes = jnp.dtype(x.dtype).itemsize
    w_bytes = jnp.dtype(w_p.dtype).itemsize
    out_bytes = jnp.dtype(out_dtype).itemsize
    budget = _vmem_budget_bytes()

    # -------- weights-resident fast path: single M grid axis, W loaded once ------- #
    w_resident_bytes = 2 * k_pad * n_pad * w_bytes + 2 * 8 * n_pad * 4
    if (not force_tiled) and w_resident_bytes <= budget // 2:
        tm = min(512, m_al)
        # keep >= 2 parallel blocks so both v7x TensorCores get work
        if m_al >= 2 * sub and m_al // tm < 2:
            tm = _round_up(-(-m_al // 2), sub)

        def _need_res(tm_):
            return (w_resident_bytes
                    + 2 * tm_ * k_pad * x_bytes
                    + 2 * tm_ * n_pad * out_bytes)

        while (_need_res(tm) > budget and tm > sub and tm % 2 == 0
               and (tm // 2) % sub == 0):
            tm //= 2

        if _need_res(tm) <= budget:
            m_pad = _round_up(m_al, tm)
            x_p = x2 if (m_pad == m and k_pad == in_dim) else jnp.pad(
                x2, ((0, m_pad - m), (0, k_pad - in_dim)))
            cost = pl.CostEstimate(
                flops=2 * m_pad * k_pad * n_pad,
                transcendentals=0,
                bytes_accessed=(m_pad * k_pad * x_bytes + k_pad * n_pad * w_bytes
                                + n_pad * 4 + m_pad * n_pad * out_bytes),
            )
            out2 = pl.pallas_call(
                functools.partial(_linear_resident_kernel, compute_dtype=compute_dtype),
                out_shape=jax.ShapeDtypeStruct((m_pad, n_pad), out_dtype),
                grid_spec=pltpu.PrefetchScalarGridSpec(
                    num_scalar_prefetch=0,
                    grid=(m_pad // tm,),
                    in_specs=[
                        pl.BlockSpec((tm, k_pad), lambda i: (i, 0)),
                        pl.BlockSpec((k_pad, n_pad), lambda i: (0, 0)),
                        pl.BlockSpec((1, n_pad), lambda i: (0, 0)),
                    ],
                    out_specs=pl.BlockSpec((tm, n_pad), lambda i: (i, 0)),
                ),
                compiler_params=pltpu.CompilerParams(
                    dimension_semantics=("parallel",),
                    vmem_limit_bytes=budget,
                ),
                cost_estimate=cost,
            )(x_p, w_p, b_p)
            return out2[:m, :out_dim].reshape(*lead_shape, out_dim)
        # else: W tile set does not fit -> fall through to the tiled path

    # -------- general (M, N, K)-tiled path with f32 accumulator scratch ----------- #
    tm = min(512, m_al)
    tk = _largest_tile(k_pad, (512, 256, 128))
    tn = _largest_tile(n_pad, (1024, 512, 256, 128))

    def _need_tiled(tm_, tk_, tn_):
        return (2 * tm_ * tk_ * x_bytes      # x tile, double-buffered
                + 2 * tk_ * tn_ * w_bytes    # w tile, double-buffered
                + 2 * 8 * tn_ * 4            # bias tile (padded to 8 sublanes)
                + 2 * tm_ * tn_ * out_bytes  # output tile, double-buffered
                + tm_ * tn_ * 4)             # f32 accumulator scratch

    while _need_tiled(tm, tk, tn) > budget:
        if tn > 256:
            tn //= 2
        elif tk > 256:
            tk //= 2
        elif tm > sub and tm % 2 == 0 and (tm // 2) % sub == 0:
            tm //= 2
        elif tn > 128:
            tn //= 2
        elif tk > 128:
            tk //= 2
        else:
            break

    m_pad = _round_up(m_al, tm)
    # keep >= 2 blocks on the parallel (M, N) axes so both v7x TensorCores get work
    if (m_pad // tm) * (n_pad // tn) < 2:
        if tn >= 256:
            tn //= 2
        elif m_al >= 2 * sub:
            tm = _round_up(-(-m_al // 2), sub)
            m_pad = _round_up(m_al, tm)

    grid = (m_pad // tm, n_pad // tn, k_pad // tk)
    x_p = x2 if (m_pad == m and k_pad == in_dim) else jnp.pad(
        x2, ((0, m_pad - m), (0, k_pad - in_dim)))

    m_blocks, n_blocks = grid[0], grid[1]
    cost = pl.CostEstimate(
        flops=2 * m_pad * k_pad * n_pad,
        transcendentals=0,
        bytes_accessed=(m_pad * k_pad * x_bytes * n_blocks     # x re-streamed per N block
                        + k_pad * n_pad * w_bytes * m_blocks   # w re-streamed per M block
                        + n_pad * 4 * m_blocks
                        + m_pad * n_pad * out_bytes),
    )

    out2 = pl.pallas_call(
        functools.partial(_linear_tiled_kernel, compute_dtype=compute_dtype),
        out_shape=jax.ShapeDtypeStruct((m_pad, n_pad), out_dtype),
        grid_spec=pltpu.PrefetchScalarGridSpec(
            num_scalar_prefetch=0,
            grid=grid,
            in_specs=[
                pl.BlockSpec((tm, tk), lambda i, j, k: (i, k)),
                pl.BlockSpec((tk, tn), lambda i, j, k: (k, j)),
                pl.BlockSpec((1, tn), lambda i, j, k: (0, j)),
            ],
            out_specs=pl.BlockSpec((tm, tn), lambda i, j, k: (i, j)),
            scratch_shapes=[pltpu.VMEM((tm, tn), jnp.float32)],
        ),
        compiler_params=pltpu.CompilerParams(
            dimension_semantics=("parallel", "parallel", "arbitrary"),
            vmem_limit_bytes=budget,
        ),
        cost_estimate=cost,
    )(x_p, w_p, b_p)

    return out2[:m, :out_dim].reshape(*lead_shape, out_dim)


def init_linear_norm_params(key, in_dim, out_dim, w_init_gain="linear", dtype=jnp.float32):
    """Xavier-uniform init matching torch.nn.init.xavier_uniform_ with calculate_gain."""
    gain = {"linear": 1.0, "relu": math.sqrt(2.0), "tanh": 5.0 / 3.0}[w_init_gain]
    bound = gain * math.sqrt(6.0 / (in_dim + out_dim))
    k_w, _ = jax.random.split(key)
    # PyTorch weight is (out_dim, in_dim); we keep its transpose for the kernel.
    w = jax.random.uniform(k_w, (out_dim, in_dim), dtype=dtype, minval=-bound, maxval=bound)
    w_t = w.T
    b = jnp.zeros((out_dim,), dtype=dtype)
    return w_t, b


if __name__ == "__main__":
    key = jax.random.PRNGKey(0)
    k1, k2, k3, k4, k5, k6 = jax.random.split(key, 6)

    # Case 1: small module-like shapes (batch=2, seq=8, hidden 32 -> 64),
    # exact f32 operands, forcing the Pallas weights-resident path.
    batch, seq, in_dim, out_dim = 2, 8, 32, 64
    x = jax.random.normal(k1, (batch, seq, in_dim), dtype=jnp.float32)
    w_t, b = init_linear_norm_params(k2, in_dim, out_dim, w_init_gain="linear")
    b = b + 0.05
    w_p, b_p = prepare_linear_norm_params(w_t, b, compute_dtype=None)
    y = linear_norm_forward(x, w_p, b_p, out_dim=out_dim, compute_dtype=None,
                            allow_xla_fallback=False)
    jax.block_until_ready(y)
    y_ref = x @ w_t + b
    assert y.shape == (batch, seq, out_dim)
    assert jnp.allclose(y, y_ref, atol=1e-5, rtol=1e-5)

    # Case 1b: same shapes through the default small-problem XLA bailout.
    y_small = linear_norm_forward(x, w_p, b_p, out_dim=out_dim, compute_dtype=None)
    jax.block_until_ready(y_small)
    assert jnp.allclose(y_small, y_ref, atol=1e-5, rtol=1e-5)

    # Case 2: ragged M / non-128 dims, default bf16-operand path (f32 accumulation),
    # exercising padding + the weights-resident kernel.
    batch2, seq2, in_dim2, out_dim2 = 2, 13, 160, 192
    x2 = jax.random.normal(k3, (batch2, seq2, in_dim2), dtype=jnp.float32)
    w_t2, b2 = init_linear_norm_params(k4, in_dim2, out_dim2, w_init_gain="relu")
    b2 = b2 + 0.1
    w_p2, b_p2 = prepare_linear_norm_params(w_t2, b2)   # bf16 weights by default
    y2 = linear_norm_forward(x2, w_p2, b_p2, out_dim=out_dim2, allow_xla_fallback=False)
    jax.block_until_ready(y2)
    y2_ref_bf16 = (jnp.dot(x2.astype(jnp.bfloat16), w_t2.astype(jnp.bfloat16),
                           preferred_element_type=jnp.float32) + b2)
    y2_ref_f32 = x2 @ w_t2 + b2
    assert y2.shape == (batch2, seq2, out_dim2)
    assert jnp.allclose(y2, y2_ref_bf16, atol=1e-2, rtol=1e-2)
    assert jnp.allclose(y2, y2_ref_f32, atol=5e-2, rtol=5e-2)

    # Case 3: force the general (M, N, K)-tiled accumulator path at a modest size.
    batch3, seq3, in_dim3, out_dim3 = 2, 128, 512, 384
    x3 = jax.random.normal(k5, (batch3, seq3, in_dim3), dtype=jnp.float32)
    w_t3, b3 = init_linear_norm_params(k6, in_dim3, out_dim3, w_init_gain="tanh")
    b3 = b3 - 0.05
    w_p3, b_p3 = prepare_linear_norm_params(w_t3, b3, compute_dtype=None)
    y3 = linear_norm_forward(x3, w_p3, b_p3, out_dim=out_dim3, compute_dtype=None,
                             force_tiled=True)
    jax.block_until_ready(y3)
    y3_ref = x3 @ w_t3 + b3
    assert y3.shape == (batch3, seq3, out_dim3)
    assert jnp.allclose(y3, y3_ref, atol=1e-4, rtol=1e-4)

    print("KERNEL_OK")
</pallas_src>

<mosaic_0001>
module attributes {stable_mosaic.version = 11 : i64} {
  func.func @_linear_resident_kernel(%arg0: i32, %arg1: memref<8x128xf32, #tpu.memory_space<vmem>>, %arg2: memref<128x128xf32, #tpu.memory_space<vmem>>, %arg3: memref<1x128xf32, #tpu.memory_space<vmem>>, %arg4: memref<8x128xf32, #tpu.memory_space<vmem>>) attributes {dimension_semantics = [#tpu.dimension_semantics<parallel>], iteration_bounds = array<i64: 2>, scalar_prefetch = 0 : i64, scratch_operands = 0 : i64, tpu.core_type = #tpu.core_type<tc>, window_params = [{transform_indices = @transform_0, window_bounds = array<i64: 8, 128>}, {pipeline_mode = #tpu.pipeline_mode<synchronous>, transform_indices = @transform_1, window_bounds = array<i64: 128, 128>}, {pipeline_mode = #tpu.pipeline_mode<synchronous>, transform_indices = @transform_2, window_bounds = array<i64: 1, 128>}, {transform_indices = @transform_3, window_bounds = array<i64: 8, 128>}]} {
    %c0 = arith.constant 0 : index
    %c0_0 = arith.constant 0 : index
    %0 = vector.load %arg1[%c0, %c0_0] : memref<8x128xf32, #tpu.memory_space<vmem>>, vector<8x128xf32>
    %c0_1 = arith.constant 0 : index
    %c0_2 = arith.constant 0 : index
    %1 = vector.load %arg2[%c0_1, %c0_2] : memref<128x128xf32, #tpu.memory_space<vmem>>, vector<128x128xf32>
    %cst = arith.constant dense<0.000000e+00> : vector<8x128xf32>
    %2 = tpu.matmul %0, %1, %cst {dimension_numbers = #tpu.dot_dimension_numbers<[1], [0], [0], [1], [0, 0, 1, 1], [], []>} : vector<8x128xf32>, vector<128x128xf32>, vector<8x128xf32> -> vector<8x128xf32>
    %c0_3 = arith.constant 0 : index
    %c0_4 = arith.constant 0 : index
    %3 = vector.load %arg3[%c0_3, %c0_4] : memref<1x128xf32, #tpu.memory_space<vmem>>, vector<1x128xf32>
    %4 = vector.broadcast %3 : vector<1x128xf32> to vector<8x128xf32>
    %5 = arith.addf %2, %4 : vector<8x128xf32>
    %c0_5 = arith.constant 0 : index
    %c0_6 = arith.constant 0 : index
    %6 = vector.load %arg4[%c0_5, %c0_6] : memref<8x128xf32, #tpu.memory_space<vmem>>, vector<8x128xf32>
    tpu.vector_store %arg4[%c0_5, %c0_6], %5 {strides = array<i32>} : memref<8x128xf32, #tpu.memory_space<vmem>>, vector<8x128xf32>,
    return
  }
  func.func @transform_0(%arg0: i32) -> (i32, i32) {
    %c0_i32 = arith.constant 0 : i32
    %c0_i32_0 = arith.constant 0 : i32
    return %arg0, %c0_i32 : i32, i32
  }
  func.func @transform_1(%arg0: i32) -> (i32, i32) {
    %c0_i32 = arith.constant 0 : i32
    %c0_i32_0 = arith.constant 0 : i32
    %c0_i32_1 = arith.constant 0 : i32
    return %c0_i32, %c0_i32_0 : i32, i32
  }
  func.func @transform_2(%arg0: i32) -> (i32, i32) {
    %c0_i32 = arith.constant 0 : i32
    %c0_i32_0 = arith.constant 0 : i32
    %c0_i32_1 = arith.constant 0 : i32
    return %c0_i32, %c0_i32_0 : i32, i32
  }
  func.func @transform_3(%arg0: i32) -> (i32, i32) {
    %c0_i32 = arith.constant 0 : i32
    %c0_i32_0 = arith.constant 0 : i32
    return %arg0, %c0_i32 : i32, i32
  }
}

</mosaic_0001>

<llo_original>
// kernel: linear_norm_forward.1
$region0: #{linear_norm_forward.1}
  #allocation0 [shape = 'u32[]', space=smem, size = 0x4, offset = 0x4, fixed_abs, tag = 'smem constant byte address 0x4 - core index']
  #allocation1 [shape = 'u32[144,128]{1,0:T(1,128)}', space=vmem, size = 0x12000, scoped, tag = 'internal scratch']
  %s0 = inlined_call_operand.vmem [shape: f32[16,128], index: 0, kind: input, shape index: {}]
  %s1 = inlined_call_operand.hbm [shape: f32[128,128], index: 1, kind: input, shape index: {}]
  %s2 = inlined_call_operand.vmem [shape: f32[1,128], index: 2, kind: input, shape index: {}]
  %s3 = inlined_call_operand.vmem [shape: f32[16,128], index: 3, kind: output, shape index: {}]
  %s4 = sld [smem:[#allocation0]]
  $region49: #{linear_norm_forward.1} parent=0
    _
  %s6 = ssub.s32 1, %s4
  %s7 = scalar_select 0, %s6, %s4
  $region1: #{linear_norm_forward.1} parent=0
    #allocation2 [shape = 'u8[65536]{0}', space=vmem, size = 0x10000, scoped, tag = 'input window, operand 1, single buffered']
    #allocation3 [shape = 's32[2]{0}', space=sflag, size = 0x8, scoped, tag = 'scoped memory for linear_norm_forward.1']
    %8 = vsyncpa [#allocation3], 0
    loop: start=0, step=1, limit=4
    $region2: #{linear_norm_forward.1} parent=1 // loop_pre_header
      _
    $region3: #{linear_norm_forward.1} parent=1 // loop_header
      %s10 = sphi 0, %s14
      %p11 = scmp.ge.s32.totalorder %s10, 4
      %s20 = sphi 0, %s22
      %s23 = sphi 0, %s20
      %s24 = sphi 0, %s23
      %s40 = sphi 0, %s24
      %s44 = sphi 0, %s44
      %s46 = sphi 0, %s44
      %s47 = sphi 0, %s46
      %s61 = sphi 0, %s47
      %s65 = sphi 0, %s65
      %s67 = sphi 0, %s65
      %s68 = sphi 0, %s67
      %s82 = sphi 0, %s68
      %s88 = sphi 0, %s90
      %s91 = sphi 0, %s88
      %s92 = sphi 0, %s91
      %s108 = sphi 0, %s92
    $region4: #{linear_norm_forward.1} parent=1 // loop_header_branch
      %13 = sbr.rel (%p11) target = $region8
    $region5: #{linear_norm_forward.1} parent=1 // loop_body
      %s15 = ssub.s32 %s10, 1
      %s16 = ssub.s32 %s10, 2
      %s17 = sadd.s32 %s10, 1
      %s18 = ssub.s32 %s10, %s17
      %p19 = scmp.eq.s32.totalorder %s18, 0
      %s21 = sadd.s32 %s20, 1
      %s22 = scalar_select %p19, %s20, %s21
      %p25 = pneg %p19
      %p26 = scmp.eq.s32.totalorder %s10, 1
      %p27 = por %p25, %p26
      %p28 = scmp.ne.s32.totalorder %s20, %s23
      %p29 = scmp.eq.s32.totalorder %s10, 0
      %p30 = por %p28, %p29
      %p31 = scmp.ne.s32.totalorder %s20, %s23
      %p32 = scmp.eq.s32.totalorder %s15, 1
      %p33 = por %p31, %p32
      %p34 = scmp.ne.s32.totalorder %s23, %s24
      %p35 = scmp.eq.s32.totalorder %s15, 0
      %p36 = por %p34, %p35
      %p37 = scmp.ne.s32.totalorder %s23, %s24
      %p38 = scmp.eq.s32.totalorder %s16, 1
      %p39 = por %p37, %p38
      %p41 = scmp.ne.s32.totalorder %s24, %s40
      %p42 = scmp.eq.s32.totalorder %s16, 0
      %p43 = por %p41, %p42
      %s45 = sadd.s32 %s44, 1
      %p48 = scmp.eq.s32.totalorder %s10, 1
      %p49 = scmp.ne.s32.totalorder %s44, %s46
      %p50 = scmp.eq.s32.totalorder %s10, 0
      %p51 = por %p49, %p50
      %p52 = scmp.ne.s32.totalorder %s44, %s46
      %p53 = scmp.eq.s32.totalorder %s15, 1
      %p54 = por %p52, %p53
      %p55 = scmp.ne.s32.totalorder %s46, %s47
      %p56 = scmp.eq.s32.totalorder %s15, 0
      %p57 = por %p55, %p56
      %p58 = scmp.ne.s32.totalorder %s46, %s47
      %p59 = scmp.eq.s32.totalorder %s16, 1
      %p60 = por %p58, %p59
      %p62 = scmp.ne.s32.totalorder %s47, %s61
      %p63 = scmp.eq.s32.totalorder %s16, 0
      %p64 = por %p62, %p63
      %s66 = sadd.s32 %s65, 1
      %p69 = scmp.eq.s32.totalorder %s10, 1
      %p70 = scmp.ne.s32.totalorder %s65, %s67
      %p71 = scmp.eq.s32.totalorder %s10, 0
      %p72 = por %p70, %p71
      %p73 = scmp.ne.s32.totalorder %s65, %s67
      %p74 = scmp.eq.s32.totalorder %s15, 1
      %p75 = por %p73, %p74
      %p76 = scmp.ne.s32.totalorder %s67, %s68
      %p77 = scmp.eq.s32.totalorder %s15, 0
      %p78 = por %p76, %p77
      %p79 = scmp.ne.s32.totalorder %s67, %s68
      %p80 = scmp.eq.s32.totalorder %s16, 1
      %p81 = por %p79, %p80
      %p83 = scmp.ne.s32.totalorder %s68, %s82
      %p84 = scmp.eq.s32.totalorder %s16, 0
      %p85 = por %p83, %p84
      %s86 = ssub.s32 %s10, %s17
      %p87 = scmp.eq.s32.totalorder %s86, 0
      %s89 = sadd.s32 %s88, 1
      %s90 = scalar_select %p87, %s88, %s89
      %p93 = pneg %p87
      %p94 = scmp.eq.s32.totalorder %s10, 1
      %p95 = por %p93, %p94
      %p96 = scmp.ne.s32.totalorder %s88, %s91
      %p97 = scmp.eq.s32.totalorder %s10, 0
      %p98 = por %p96, %p97
      %p99 = scmp.ne.s32.totalorder %s88, %s91
      %p100 = scmp.eq.s32.totalorder %s15, 1
      %p101 = por %p99, %p100
      %p102 = scmp.ne.s32.totalorder %s91, %s92
      %p103 = scmp.eq.s32.totalorder %s15, 0
      %p104 = por %p102, %p103
      %p105 = scmp.ne.s32.totalorder %s91, %s92
      %p106 = scmp.eq.s32.totalorder %s16, 1
      %p107 = por %p105, %p106
      %p109 = scmp.ne.s32.totalorder %s92, %s108
      %p110 = scmp.eq.s32.totalorder %s16, 0
      %p111 = por %p109, %p110
      %p112 = scmp.le.s32.totalorder 1, %s10
      %p113 = scmp.lt.s32.totalorder %s10, 3
      %p114 = pnand %p112, %p113
      %p115 = pneg %p114
      // Predicated region
      $region9: #{linear_norm_forward.1} parent=5 // pred_check
        _
      $region10: #{linear_norm_forward.1} parent=5 // pred_check_branch
        %117 = sbr.rel (%p114) target = $region12
      $region11: #{linear_norm_forward.1} parent=5 // pred_region
        %s118 = ssub.s32 %s10, 1
        // Predicated region
        $region13: #{linear_norm_forward.1} parent=11 // pred_check
          %p119 = pneg %p57
        $region14: #{linear_norm_forward.1} parent=11 // pred_check_branch
          %121 = sbr.rel (%p119) target = $region16
        $region15: #{linear_norm_forward.1} parent=11 // pred_region
          %s123 = ssub.s32 2048, 2048
          %124 = vsyncadd [#allocation3], %s123
          %s125 = sshll.u32 [#allocation2], 4
          %s126 = int_to_ptr.vmem [resolvable:$true] %s125
          %131 = dma.hbm_to_vmem [thread:$0]  %s1, 2048, %s126, [#allocation3], 128, 128, 8
        $region16: #{linear_norm_forward.1} parent=11 // pred_fallthru
          _
        // Predicated region
        $region17: #{linear_norm_forward.1} parent=11 // pred_check
          %p132 = pneg %p78
        $region18: #{linear_norm_forward.1} parent=11 // pred_check_branch
          %134 = sbr.rel (%p132) target = $region20
        $region19: #{linear_norm_forward.1} parent=11 // pred_region
          _
        $region20: #{linear_norm_forward.1} parent=11 // pred_fallthru
          _
      $region12: #{linear_norm_forward.1} parent=5 // pred_fallthru
        _
      %p135 = scmp.lt.s32.totalorder %s10, 2
      // Predicated region
      $region21: #{linear_norm_forward.1} parent=5 // pred_check
        %p136 = pneg %p135
      $region22: #{linear_norm_forward.1} parent=5 // pred_check_branch
        %138 = sbr.rel (%p136) target = $region24
      $region23: #{linear_norm_forward.1} parent=5 // pred_region
        // Predicated region
        $region25: #{linear_norm_forward.1} parent=23 // pred_check
          %p139 = pneg %p30
        $region26: #{linear_norm_forward.1} parent=23 // pred_check_branch
          %141 = sbr.rel (%p139) target = $region28
        $region27: #{linear_norm_forward.1} parent=23 // pred_region
          %p142 = scmp.lt.s32.totalorder %s10, 1
          %s143 = scalar_select %p142, %s10, 1
          %s144 = smul.addr %s143, 8
          %s145 = scalar_lea.vmem %s0, %s144
        $region28: #{linear_norm_forward.1} parent=23 // pred_fallthru
          _
      $region24: #{linear_norm_forward.1} parent=5 // pred_fallthru
        _
      %p146 = scmp.le.s32.totalorder 1, %s10
      %p147 = scmp.lt.s32.totalorder %s10, 3
      %p148 = pnand %p146, %p147
      %p149 = pneg %p148
      // Predicated region
      $region29: #{linear_norm_forward.1} parent=5 // pred_check
        _
      $region30: #{linear_norm_forward.1} parent=5 // pred_check_branch
        %151 = sbr.rel (%p148) target = $region32
      $region31: #{linear_norm_forward.1} parent=5 // pred_region
        %s152 = ssub.s32 %s10, 1
        // Predicated region
        $region33: #{linear_norm_forward.1} parent=31 // pred_check
          %p153 = pneg %p57
        $region34: #{linear_norm_forward.1} parent=31 // pred_check_branch
          %155 = sbr.rel (%p153) target = $region36
        $region35: #{linear_norm_forward.1} parent=31 // pred_region
          %156 = dma.done [#allocation3], 2048
        $region36: #{linear_norm_forward.1} parent=31 // pred_fallthru
          _
        %p157 = scmp.lt.s32.totalorder %s15, 1
        %s158 = scalar_select %p157, %s15, 1
        %s159 = smul.addr %s158, 8
        %s160 = scalar_lea.vmem %s0, %s159
        %p161 = pneg %p36
        %p162 = pneg %p33
        %p163 = pneg %p57
        %p164 = pneg %p54
        %p165 = pneg %p78
        %p166 = pneg %p75
        %p167 = pneg %p104
        %p168 = pneg %p101
        %p169 = scmp.lt.s32.totalorder %s15, 1
        %s170 = scalar_select %p169, %s15, 1
        %s171 = smul.addr %s170, 8
        %s172 = scalar_lea.vmem %s3, %s171
        %p173 = scmp.lt.s32.totalorder %s15, 1
        %s174 = scalar_select %p173, %s15, 1
        %s175 = smul.addr %s174, 8
        %s176 = scalar_lea.vmem %s0, %s175
        %p177 = scmp.lt.s32.totalorder %s15, 1
        %s178 = scalar_select %p177, %s15, 1
        %s179 = smul.addr %s178, 8
        %s180 = scalar_lea.vmem %s3, %s179
        %v181 = vld [vmem:[%s176] sm:$0xff]
        %v182 = vld [vmem:[#allocation2] sm:$0xff]
        %v183 = vld [vmem:[#allocation2 + $0x8] sm:$0xff]
        %v184 = vld [vmem:[#allocation2 + $0x10] sm:$0xff]
        %v185 = vld [vmem:[#allocation2 + $0x18] sm:$0xff]
        %v186 = vld [vmem:[#allocation2 + $0x20] sm:$0xff]
        %v187 = vld [vmem:[#allocation2 + $0x28] sm:$0xff]
        %v188 = vld [vmem:[#allocation2 + $0x30] sm:$0xff]
        %v189 = vld [vmem:[#allocation2 + $0x38] sm:$0xff]
        %v190 = vld [vmem:[#allocation2 + $0x40] sm:$0xff]
        %v191 = vld [vmem:[#allocation2 + $0x48] sm:$0xff]
        %v192 = vld [vmem:[#allocation2 + $0x50] sm:$0xff]
        %v193 = vld [vmem:[#allocation2 + $0x58] sm:$0xff]
        %v194 = vld [vmem:[#allocation2 + $0x60] sm:$0xff]
        %v195 = vld [vmem:[#allocation2 + $0x68] sm:$0xff]
        %v196 = vld [vmem:[#allocation2 + $0x70] sm:$0xff]
        %v197 = vld [vmem:[#allocation2 + $0x78] sm:$0xff]
        %v198 = vld [vmem:[%s2] sm:$0x1]
        %v200 = vlaneseq
        %v201 = vshrl.u32 %v200, 7
        %v202 = vsub.s32 0, %v201
        %v203 = vrot.slane %v198, %v202
        %205 = vmatprep.subr.mxu0 0.0
        %206 = vmatpush1.msra.mxu0 %v182
        %207 = vmatprep.subr.mxu0 0.0
        %208 = vmatpush1.msra.mxu0 %v183
        %209 = vmatprep.subr.mxu0 0.0
        %210 = vmatpush1.msra.mxu0 %v184
        %211 = vmatprep.subr.mxu0 0.0
        %212 = vmatpush1.msra.mxu0 %v185
        %213 = vmatprep.subr.mxu0 0.0
        %214 = vmatpush1.msra.mxu0 %v186
        %215 = vmatprep.subr.mxu0 0.0
        %216 = vmatpush1.msra.mxu0 %v187
        %217 = vmatprep.subr.mxu0 0.0
        %218 = vmatpush1.msra.mxu0 %v188
        %219 = vmatprep.subr.mxu0 0.0
        %220 = vmatpush1.msra.mxu0 %v189
        %221 = vmatprep.subr.mxu0 0.0
        %222 = vmatpush1.msra.mxu0 %v190
        %223 = vmatprep.subr.mxu0 0.0
        %224 = vmatpush1.msra.mxu0 %v191
        %225 = vmatprep.subr.mxu0 0.0
        %226 = vmatpush1.msra.mxu0 %v192
        %227 = vmatprep.subr.mxu0 0.0
        %228 = vmatpush1.msra.mxu0 %v193
        %229 = vmatprep.subr.mxu0 0.0
        %230 = vmatpush1.msra.mxu0 %v194
        %231 = vmatprep.subr.mxu0 0.0
        %232 = vmatpush1.msra.mxu0 %v195
        %233 = vmatprep.subr.mxu0 0.0
        %234 = vmatpush1.msra.mxu0 %v196
        %235 = vmatprep.subr.mxu0 0.0
        %236 = vmatpush1.msra.mxu0 %v197
        %237 = vmatprep.subr.mxu0 0.0
        %238 = vmatpush1.msra.mxu0 0.0
        %239 = vmatprep.subr.mxu0 0.0
        %240 = vmatpush1.msra.mxu0 0.0
        %241 = vmatprep.subr.mxu0 0.0
        %242 = vmatpush1.msra.mxu0 0.0
        %243 = vmatprep.subr.mxu0 0.0
        %244 = vmatpush1.msra.mxu0 0.0
        %245 = vmatprep.subr.mxu0 0.0
        %246 = vmatpush1.msra.mxu0 0.0
        %247 = vmatprep.subr.mxu0 0.0
        %248 = vmatpush1.msra.mxu0 0.0
        %249 = vmatprep.subr.mxu0 0.0
        %250 = vmatpush1.msra.mxu0 0.0
        %251 = vmatprep.subr.mxu0 0.0
        %252 = vmatpush1.msra.mxu0 0.0
        %253 = vmatprep.subr.mxu0 0.0
        %254 = vmatpush1.msra.mxu0 0.0
        %255 = vmatprep.subr.mxu0 0.0
        %256 = vmatpush1.msra.mxu0 0.0
        %257 = vmatprep.subr.mxu0 0.0
        %258 = vmatpush1.msra.mxu0 0.0
        %259 = vmatprep.subr.mxu0 0.0
        %260 = vmatpush1.msra.mxu0 0.0
        %261 = vmatprep.subr.mxu0 0.0
        %262 = vmatpush1.msra.mxu0 0.0
        %263 = vmatprep.subr.mxu0 0.0
        %264 = vmatpush1.msra.mxu0 0.0
        %265 = vmatprep.subr.mxu0 0.0
        %266 = vmatpush1.msra.mxu0 0.0
        %267 = vmatprep.subr.mxu0 0.0
        %268 = vmatpush1.msra.mxu0 0.0
        %269 = vmatprep.mubr.f32.mxu0 0.0
        %270 = vmatmul.mubr.f32.gmra.mrb[0].mxu0 %v181
        %v271 = vpop.f32.mrb[0].mxu0
        %v272 = vadd.f32 %v203, %v271
        %v273 = vpop.f32.mrb[0].mxu0
        %274 = vdwg.mxu0
        %275 = vst [vmem:[%s180] sm:$0xff] %v272
        %p276 = scmp.lt.s32.totalorder %s15, 1
        %s277 = scalar_select %p276, %s15, 1
        %s278 = smul.addr %s277, 8
        %s279 = scalar_lea.vmem %s3, %s278
        // Predicated region
        $region37: #{linear_norm_forward.1} parent=31 // pred_check
          %p280 = pneg %p101
        $region38: #{linear_norm_forward.1} parent=31 // pred_check_branch
          %282 = sbr.rel (%p280) target = $region40
        $region39: #{linear_norm_forward.1} parent=31 // pred_region
          _
        $region40: #{linear_norm_forward.1} parent=31 // pred_fallthru
          _
      $region32: #{linear_norm_forward.1} parent=5 // pred_fallthru
        _
      %p283 = scmp.le.s32.totalorder 2, %s10
      // Predicated region
      $region41: #{linear_norm_forward.1} parent=5 // pred_check
        %p284 = pneg %p283
      $region42: #{linear_norm_forward.1} parent=5 // pred_check_branch
        %286 = sbr.rel (%p284) target = $region44
      $region43: #{linear_norm_forward.1} parent=5 // pred_region
        %s287 = ssub.s32 %s10, 2
        // Predicated region
        $region45: #{linear_norm_forward.1} parent=43 // pred_check
          %p288 = pneg %p107
        $region46: #{linear_norm_forward.1} parent=43 // pred_check_branch
          %290 = sbr.rel (%p288) target = $region48
        $region47: #{linear_norm_forward.1} parent=43 // pred_region
          %p291 = scmp.lt.s32.totalorder %s16, 1
          %s292 = scalar_select %p291, %s16, 1
          %s293 = smul.addr %s292, 8
          %s294 = scalar_lea.vmem %s3, %s293
        $region48: #{linear_norm_forward.1} parent=43 // pred_fallthru
          _
      $region44: #{linear_norm_forward.1} parent=5 // pred_fallthru
        _
    $region6: #{linear_norm_forward.1} parent=1 // loop_footer
      %s14 = sadd.s32 1, %s10
    $region7: #{linear_norm_forward.1} parent=1 // loop_footer_branch
      %9 = sbr.rel target = $region3
    $region8: #{linear_norm_forward.1} parent=1 // loop_exit
      _
    %295 = vsyncpa [#allocation3], 1
    %s296 = scalar_lea.sflag [#allocation3], 1
    %297 = vsyncpa %s296, 1

</llo_original>
